<compile_context>
chip_gen: v7x
topology: tpu7x:2x2x1
jax: 0.10.0
libtpu: 0.0.40
codegen_flags: <defaults>
</compile_context>

<pallas_src>
import functools

import numpy as np
import jax
import jax.numpy as jnp
from jax.experimental import pallas as pl
from jax.experimental.pallas import tpu as pltpu


def make_pe_table(d_model: int, max_len: int = 5000) -> jnp.ndarray:
    """Reference buffer, identical math to the PyTorch __init__ (testing only)."""
    position = jnp.arange(max_len, dtype=jnp.float32)[:, None]            # (L, 1)
    div_term = jnp.exp(jnp.arange(0, d_model, 2, dtype=jnp.float32)
                       * (-np.log(10000.0) / d_model))                    # (D/2,)
    angles = position * div_term                                          # (L, D/2)
    pe = jnp.zeros((max_len, d_model), dtype=jnp.float32)
    pe = pe.at[:, 0::2].set(jnp.sin(angles))
    pe = pe.at[:, 1::2].set(jnp.cos(angles))
    return pe[:, None, :]              # (L, 1, D), like pe.unsqueeze(0).transpose(0,1)


def _round_up(n: int, m: int) -> int:
    return (n + m - 1) // m * m


@functools.lru_cache(maxsize=None)
def _chip_params():
    """(target_block_bytes, vmem_cap_bytes, tensorcores) for the local TPU."""
    vmem_cap = None
    try:
        vmem_cap = int(pltpu.get_tpu_info().vmem_capacity_bytes)
    except Exception:
        vmem_cap = None
    kind = ""
    try:
        kind = jax.devices()[0].device_kind.lower()
    except Exception:
        pass
    is_v7x = (vmem_cap is not None and vmem_cap <= (64 << 20)) or ("7" in kind)
    if is_v7x:
        # v7x: ~3.2 TB/s per TC, but only 64 MiB VMEM and 2 TensorCores/chip.
        return 8 << 20, 48 << 20, 2
    # v5e / v6e: single TensorCore, 128 MiB VMEM -> 4 MiB blocks are ~roofline.
    return 4 << 20, 96 << 20, 1


def _pick_seq_tile(S: int, row_bytes: int, target_bytes: int, num_tc: int) -> int:
    """Seq tile: ~target_bytes per x block, multiple of 8 sublanes."""
    if S <= 8:
        return S                                   # block dims == full dims (legal)
    t = min(S, max(1, target_bytes // max(row_bytes, 1)))
    t = max(8, t // 8 * 8)
    if num_tc >= 2:
        # >= 2 grid steps per TensorCore so each core gets pipelined work;
        # single-TC chips never get a forced split.
        min_steps = 2 * num_tc
        if S >= 8 * min_steps and pl.cdiv(S, t) < min_steps:
            t = max(8, (S // min_steps) // 8 * 8)
    return t


def _vmem_limit(seq_tile: int, bd: int, isz: int, cap: int) -> int:
    """Limit from the real (padded) double-buffered footprint + headroom."""
    tp = _round_up(max(seq_tile, 1), 8)
    lp = _round_up(bd, 128)
    xo_block = tp * lp * isz                 # one x or out block
    tables = 2 * 8 * lp * 4                  # freq + phase (sublane-padded)
    interm = 2 * tp * lp * 4                 # f32 pe + f32 x intermediates
    need = 2 * (2 * xo_block + tables) + interm + (2 << 20)
    return int(min(max(need, 8 << 20), cap))


@functools.lru_cache(maxsize=None)
def _lane_tables(d_model: int, batch: int):
    """Per-lane frequency and phase for the folded (B*D) lane axis."""
    div_term = np.exp(np.arange(0, d_model, 2, dtype=np.float32)
                      * np.float32(-np.log(10000.0) / d_model)).astype(np.float32)
    freq = np.repeat(div_term, 2)[:d_model]                    # freq[2k]=freq[2k+1]
    phase = np.tile(np.array([0.0, np.pi / 2.0], np.float32),
                    (d_model + 1) // 2)[:d_model]              # 0 -> sin, pi/2 -> cos
    freq = np.tile(freq, batch)[None, :]                       # (1, B*D)
    phase = np.tile(phase, batch)[None, :]                     # (1, B*D)
    return jnp.asarray(freq), jnp.asarray(phase)


def _pe_add_kernel(x_ref, freq_ref, phase_ref, o_ref):
    # x_ref / o_ref: (seq_tile, B*D);  freq_ref / phase_ref: (1, B*D) f32.
    t = x_ref.shape[0]
    pos = (pl.program_id(0) * t
           + jax.lax.broadcasted_iota(jnp.int32, (t, 1), 0)).astype(jnp.float32)
    # pe[pos, d] = sin(pos * freq[d] + phase[d]); one EUP sin per element,
    # hidden under the HBM-bound DMA.  Computed in f32 (v5e has no bf16 EUP).
    pe = jnp.sin(pos * freq_ref[...] + phase_ref[...])          # (t, B*D) f32
    o_ref[...] = (x_ref[...].astype(jnp.float32) + pe).astype(o_ref.dtype)


def positional_encoding_forward(x: jnp.ndarray, *, max_len: int = 5000) -> jnp.ndarray:
    """x: (S, B, D). Returns x + pe[:S] (sinusoidal buffer), dtype x.dtype."""
    assert x.ndim == 3
    S, B, D = x.shape
    assert S <= max_len, "sequence length exceeds max_len of the PE buffer"
    BD = B * D
    isz = x.dtype.itemsize

    target_bytes, vmem_cap, num_tc = _chip_params()
    t = _pick_seq_tile(S, BD * isz, target_bytes, num_tc)
    freq, phase = _lane_tables(D, B)
    x2 = x.reshape(S, BD)                         # contiguous fold: free view

    cost = pl.CostEstimate(flops=3 * S * BD, transcendentals=S * BD,
                           bytes_accessed=2 * S * BD * isz + 8 * BD)

    # TODO(synk): if 8 rows x B*D lanes ever exceeds the VMEM budget (B*D in the
    # millions), add a second lane-tiling grid axis; unnecessary at these sizes.
    out2 = pl.pallas_call(
        _pe_add_kernel,
        out_shape=jax.ShapeDtypeStruct((S, BD), x.dtype),
        grid=(pl.cdiv(S, t),),
        in_specs=[pl.BlockSpec((t, BD), lambda s: (s, 0)),
                  pl.BlockSpec((1, BD), lambda s: (0, 0)),
                  pl.BlockSpec((1, BD), lambda s: (0, 0))],
        out_specs=pl.BlockSpec((t, BD), lambda s: (s, 0)),
        input_output_aliases={0: 0},
        cost_estimate=cost,
        compiler_params=pltpu.CompilerParams(
            dimension_semantics=("parallel",),
            vmem_limit_bytes=_vmem_limit(t, BD, isz, vmem_cap)),
    )(x2, freq, phase)
    return out2.reshape(S, B, D)


if __name__ == "__main__":
    base_key = jax.random.PRNGKey(0)

    def check(seq_len, batch, d_model, max_len=64):
        k = jax.random.fold_in(base_key, seq_len * 10000 + batch * 100 + d_model)
        x = jax.random.normal(k, (seq_len, batch, d_model), dtype=jnp.float32)
        pe = make_pe_table(d_model, max_len=max_len)          # reference buffer
        ref = x + pe[:seq_len]                                # computed before kernel call
        out = jax.block_until_ready(positional_encoding_forward(x, max_len=max_len))
        np.testing.assert_allclose(np.asarray(out), np.asarray(ref),
                                   rtol=1e-5, atol=1e-5)

    # Small shapes implied by the module (seq-first (S, B, D), like PyTorch):
    check(8, 2, 32)     # tiny, sub-128 lane width (B*D = 64)
    check(16, 2, 128)   # 128-aligned lanes
    check(16, 1, 64)    # batch 1
    check(64, 2, 64)    # multi-step grid on 2-TensorCore parts
    print("KERNEL_OK")
</pallas_src>

<mosaic_0001>
module attributes {stable_mosaic.version = 11 : i64} {
  func.func @_pe_add_kernel(%arg0: i32, %arg1: memref<8x64xf32, #tpu.memory_space<vmem>>, %arg2: memref<1x64xf32, #tpu.memory_space<vmem>>, %arg3: memref<1x64xf32, #tpu.memory_space<vmem>>, %arg4: memref<8x64xf32, #tpu.memory_space<vmem>>) attributes {dimension_semantics = [#tpu.dimension_semantics<parallel>], iteration_bounds = array<i64: 1>, scalar_prefetch = 0 : i64, scratch_operands = 0 : i64, tpu.core_type = #tpu.core_type<tc>, window_params = [{transform_indices = @transform_0, window_bounds = array<i64: 8, 64>}, {pipeline_mode = #tpu.pipeline_mode<synchronous>, transform_indices = @transform_1, window_bounds = array<i64: 1, 64>}, {pipeline_mode = #tpu.pipeline_mode<synchronous>, transform_indices = @transform_2, window_bounds = array<i64: 1, 64>}, {transform_indices = @transform_3, window_bounds = array<i64: 8, 64>}]} {
    %c8_i32 = arith.constant 8 : i32
    %0 = arith.muli %arg0, %c8_i32 : i32
    %1 = tpu.iota {dimensions = array<i32: 0>} : vector<8x1xi32>
    %2 = vector.broadcast %0 : i32 to vector<8x1xi32>
    %3 = arith.addi %2, %1 : vector<8x1xi32>
    %4 = arith.sitofp %3 : vector<8x1xi32> to vector<8x1xf32>
    %c0 = arith.constant 0 : index
    %c0_0 = arith.constant 0 : index
    %5 = vector.load %arg2[%c0, %c0_0] : memref<1x64xf32, #tpu.memory_space<vmem>>, vector<1x64xf32>
    %6 = vector.broadcast %4 : vector<8x1xf32> to vector<8x64xf32>
    %7 = vector.broadcast %5 : vector<1x64xf32> to vector<8x64xf32>
    %8 = arith.mulf %6, %7 : vector<8x64xf32>
    %c0_1 = arith.constant 0 : index
    %c0_2 = arith.constant 0 : index
    %9 = vector.load %arg3[%c0_1, %c0_2] : memref<1x64xf32, #tpu.memory_space<vmem>>, vector<1x64xf32>
    %10 = vector.broadcast %9 : vector<1x64xf32> to vector<8x64xf32>
    %11 = arith.addf %8, %10 : vector<8x64xf32>
    %12 = math.sin %11 : vector<8x64xf32>
    %c0_3 = arith.constant 0 : index
    %c0_4 = arith.constant 0 : index
    %13 = vector.load %arg1[%c0_3, %c0_4] : memref<8x64xf32, #tpu.memory_space<vmem>>, vector<8x64xf32>
    %14 = arith.addf %13, %12 : vector<8x64xf32>
    %c0_5 = arith.constant 0 : index
    %c0_6 = arith.constant 0 : index
    %15 = vector.load %arg4[%c0_5, %c0_6] : memref<8x64xf32, #tpu.memory_space<vmem>>, vector<8x64xf32>
    tpu.vector_store %arg4[%c0_5, %c0_6], %14 {strides = array<i32>} : memref<8x64xf32, #tpu.memory_space<vmem>>, vector<8x64xf32>,
    return
  }
  func.func @transform_0(%arg0: i32) -> (i32, i32) {
    %c0_i32 = arith.constant 0 : i32
    %c0_i32_0 = arith.constant 0 : i32
    return %arg0, %c0_i32 : i32, i32
  }
  func.func @transform_1(%arg0: i32) -> (i32, i32) {
    %c0_i32 = arith.constant 0 : i32
    %c0_i32_0 = arith.constant 0 : i32
    %c0_i32_1 = arith.constant 0 : i32
    return %c0_i32, %c0_i32_0 : i32, i32
  }
  func.func @transform_2(%arg0: i32) -> (i32, i32) {
    %c0_i32 = arith.constant 0 : i32
    %c0_i32_0 = arith.constant 0 : i32
    %c0_i32_1 = arith.constant 0 : i32
    return %c0_i32, %c0_i32_0 : i32, i32
  }
  func.func @transform_3(%arg0: i32) -> (i32, i32) {
    %c0_i32 = arith.constant 0 : i32
    %c0_i32_0 = arith.constant 0 : i32
    return %arg0, %c0_i32 : i32, i32
  }
}

</mosaic_0001>

<llo_original>
// kernel: tpu_custom_call.1
$region0: #{tpu_custom_call.1}
  #allocation0 [shape = 'u32[]', space=smem, size = 0x4, offset = 0x4, fixed_abs, tag = 'smem constant byte address 0x4 - core index']
  #allocation1 [shape = 'u32[144,128]{1,0:T(1,128)}', space=vmem, size = 0x12000, scoped, tag = 'internal scratch']
  %s0 = inlined_call_operand.hbm [shape: f32[8,64], index: 0, kind: input, shape index: {}, may-alias: {0,3}]
  %s1 = inlined_call_operand.vmem [shape: f32[1,64], index: 1, kind: input, shape index: {}]
  %s2 = inlined_call_operand.vmem [shape: f32[1,64], index: 2, kind: input, shape index: {}]
  %s3 = inlined_call_operand.hbm [shape: f32[8,64], index: 3, kind: output, shape index: {}, may-alias: {0,3}]
  %s4 = sld [smem:[#allocation0]]
  $region26: #{tpu_custom_call.1} parent=0
    _
  %s6 = ssub.s32 1, %s4
  %s7 = scalar_select 0, %s6, %s4
  $region1: #{tpu_custom_call.1} parent=0
    #allocation2 [shape = 'u8[4096]{0}', space=vmem, size = 0x1000, scoped, tag = 'input window, operand 0, single buffered']
    #allocation3 [shape = 's32[1]{0}', space=sflag, size = 0x4, scoped, tag = 'scoped memory for tpu_custom_call.1']
    #allocation4 [shape = 's32[1]{0}', space=sflag, size = 0x4, scoped, tag = 'scoped memory for tpu_custom_call.1']
    #allocation5 [shape = 'u8[4096]{0}', space=vmem, size = 0x1000, scoped, tag = 'output window, operand 0, single buffered']
    %8 = vsyncpa [#allocation3], 0
    %9 = vsyncpa [#allocation4], 0
    // Predicated region
    $region2: #{tpu_custom_call.1} parent=1 // pred_check
      _
    $region3: #{tpu_custom_call.1} parent=1 // pred_check_branch
      %11 = sbr.rel (0) target = $region5
    $region4: #{tpu_custom_call.1} parent=1 // pred_region
      %s13 = ssub.s32 128, 128
      %14 = vsyncadd [#allocation3], %s13
      %s16 = sshll.u32 [#allocation2], 4
      %s17 = int_to_ptr.vmem [resolvable:$true] %s16
      %19 = dma.hbm_to_vmem [thread:$0]  %s0, 128, %s17, [#allocation3]
    $region5: #{tpu_custom_call.1} parent=1 // pred_fallthru
      _
    // Predicated region
    $region6: #{tpu_custom_call.1} parent=1 // pred_check
      _
    $region7: #{tpu_custom_call.1} parent=1 // pred_check_branch
      %21 = sbr.rel (0) target = $region9
    $region8: #{tpu_custom_call.1} parent=1 // pred_region
      _
    $region9: #{tpu_custom_call.1} parent=1 // pred_fallthru
      _
    // Predicated region
    $region10: #{tpu_custom_call.1} parent=1 // pred_check
      _
    $region11: #{tpu_custom_call.1} parent=1 // pred_check_branch
      %23 = sbr.rel (0) target = $region13
    $region12: #{tpu_custom_call.1} parent=1 // pred_region
      _
    $region13: #{tpu_custom_call.1} parent=1 // pred_fallthru
      _
    // Predicated region
    $region14: #{tpu_custom_call.1} parent=1 // pred_check
      _
    $region15: #{tpu_custom_call.1} parent=1 // pred_check_branch
      %25 = sbr.rel (0) target = $region17
    $region16: #{tpu_custom_call.1} parent=1 // pred_region
      %26 = dma.done [#allocation3], 128
    $region17: #{tpu_custom_call.1} parent=1 // pred_fallthru
      _
    %s27 = smul.u32 0, 8
    %v28 = vlaneseq
    %v29 = vshrl.u32 %v28, 7
    %v30 = vstv %s27
    %v31 = vadd.s32 %v30, %v29
    %v32 = vcvt.s32.f32 %v31
    %v33 = vld [vmem:[%s1] sm:$0x1]
    %v35 = vlaneseq
    %v36 = vshrl.u32 %v35, 7
    %v37 = vsub.s32 0, %v36
    %v38 = vrot.slane %v33, %v37
    %v40 = vmul.f32 %v32, %v38
    %v41 = vld [vmem:[%s2] sm:$0x1]
    %v43 = vlaneseq
    %v44 = vshrl.u32 %v43, 7
    %v45 = vsub.s32 0, %v44
    %v46 = vrot.slane %v41, %v45
    %v48 = vadd.f32 %v40, %v46
    %v49 = vand.u32 2147483647, %v48
    %vm50 = vcmp.le.f32.partialorder %v49, 0.7853982
    %vm51 = vcmp.lt.s32.totalorder %v48, 0
    %v52 = vand.u32 %v48, 2139095040
    %v53 = vshrl.u32 %v52, 23
    %v54 = vsub.s32 %v53, 127
    %v55 = vand.u32 2147483647, %v48
    %v56 = vand.u32 %v55, 8388607
    %v57 = vor.u32 %v56, 8388608
    %v58 = vsub.s32 0, %v57
    %v59 = vadd.s32 %v54, 1
    %vm60 = vcmp.gt.s32.totalorder %v59, 0
    %v61 = vsel %vm60, %v59, 0
    %v62 = vshrl.u32 %v61, 5
    %v63 = vand.u32 %v61, 31
    %v64 = vsub.s32 32, %v63
    %v65 = vshrl.u32 683565275, %v64
    %v66 = vshll.u32 683565275, %v63
    %v67 = vshrl.u32 2475754826, %v64
    %v68 = vor.u32 %v66, %v67
    %v69 = vshll.u32 2475754826, %v63
    %v70 = vshrl.u32 2131351028, %v64
    %v71 = vor.u32 %v69, %v70
    %v72 = vshll.u32 2131351028, %v63
    %v73 = vshrl.u32 2102212464, %v64
    %v74 = vor.u32 %v72, %v73
    %v75 = vshll.u32 2102212464, %v63
    %v76 = vshrl.u32 920167782, %v64
    %v77 = vor.u32 %v75, %v76
    %v78 = vshll.u32 920167782, %v63
    %v79 = vshrl.u32 1326507024, %v64
    %v80 = vor.u32 %v78, %v79
    %vm81 = vcmp.lt.s32.totalorder %v62, 1
    %vm82 = vcmp.lt.s32.totalorder %v62, 2
    %vm83 = vcmp.lt.s32.totalorder %v62, 3
    %vm84 = vcmp.lt.s32.totalorder %v62, 4
    %v85 = vsel %vm81, %v65, %v68
    %v86 = vsel %vm84, %v74, 2102212464
    %v87 = vsel %vm83, %v71, %v86
    %v88 = vsel %vm82, %v85, %v87
    %v89 = vsel %vm81, %v68, %v71
    %v90 = vsel %vm84, %v77, 920167782
    %v91 = vsel %vm83, %v74, %v90
    %v92 = vsel %vm82, %v89, %v91
    %v93 = vsel %vm81, %v71, %v74
    %v94 = vsel %vm84, %v80, 1326507024
    %v95 = vsel %vm83, %v77, %v94
    %v96 = vsel %vm82, %v93, %v95
    %v97 = vshll.u32 %v57, 8
    %v98 = vmul.u32.u64.compose %v97, %v96
    %v99 = vextract.low.u32 %v98
    %v100 = vextract.high.u32 %v98
    %v101 = vmul.u32.u64.compose %v97, %v92
    %v102 = vextract.low.u32 %v101
    %v103 = vextract.high.u32 %v101
    %v104 = vmul.u32 %v97, %v88
    %v105 = vadd.s32 %v100, %v102
    %vm106 = vc.u32 %v100, %v102
    %v107 = vadd.s32 %v103, 1
    %v108 = vsel %vm106, %v107, %v103
    %v109 = vadd.s32 %v104, %v108
    %v110 = vadd.s32 %v109, 536870912
    %v111 = vshrl.u32 %v110, 30
    %v112 = vshll.u32 %v111, 30
    %v113 = vsub.s32 %v109, %v112
    %vm114 = vcmp.lt.s32.totalorder %v113, 0
    %v115 = vsub.s32 0, %v113
    %v116 = vsel %vm114, %v115, %v113
    %v117 = vclz %v116
    %v118 = vsub.s32 %v117, 2
    %vm119 = vcmp.gt.s32.totalorder 0, %v118
    %v120 = vsel %vm119, 0, %v118
    %v121 = vsub.s32 32, %v120
    %v122 = vshll.u32 %v113, %v120
    %v123 = vshrl.u32 %v105, %v121
    %v124 = vor.u32 %v122, %v123
    %v125 = vsub.s32 4294967266, %v120
    %v126 = vadd.s32 %v125, 127
    %v127 = vshll.u32 %v126, 23
    %v128 = vor.u32 4788187, %v127
    %v129 = vand.u32 2147483647, %v128
    %v131 = vcvt.s32.f32 %v124
    %v132 = vmul.f32 %v131, %v129
    %v133 = vxor.u32 %v132, 2147483648
    %v134 = vsel %vm51, %v133, %v132
    %v135 = vsub.s32 4, %v111
    %v136 = vsel %vm51, %v135, %v111
    %v137 = vsel %vm50, %v48, %v134
    %v138 = vsel %vm50, 0, %v136
    %v139 = vcosq.f32.pop %v137
    %v140 = vsinq.f32.pop %v137
    %vm141 = vweird.f32 %v48
    %v142 = vadd.s32 %v138, 3
    %v143 = vand.u32 %v142, 3
    %vm144 = vcmp.lt.s32.totalorder %v143, 2
    %vm145 = vcmp.eq.s32.totalorder %v143, 0
    %v146 = vxor.u32 %v140, 2147483648
    %v147 = vsel %vm145, %v139, %v146
    %vm148 = vcmp.eq.s32.totalorder %v143, 2
    %v149 = vxor.u32 %v139, 2147483648
    %v150 = vsel %vm148, %v149, %v140
    %v151 = vsel %vm144, %v147, %v150
    %v152 = vsel %vm141, nan, %v151
    %v153 = vld [vmem:[#allocation2] sm:$0xff]
    %v154 = vadd.f32 %v153, %v152
    %vm155 = vcmask 523264
    %156 = vst.msk [vmem:[#allocation5] sm:$0xff] %vm155, %v154
    // Predicated region
    $region18: #{tpu_custom_call.1} parent=1 // pred_check
      _
    $region19: #{tpu_custom_call.1} parent=1 // pred_check_branch
      %158 = sbr.rel (0) target = $region21
    $region20: #{tpu_custom_call.1} parent=1 // pred_region
      %s160 = ssub.s32 128, 128
      %161 = vsyncadd [#allocation4], %s160
      %s163 = sshll.u32 [#allocation5], 4
      %s164 = int_to_ptr.vmem [resolvable:$true] %s163
      %166 = dma.vmem_to_hbm [thread:$0]  %s164, 128, %s3, [#allocation4]
    $region21: #{tpu_custom_call.1} parent=1 // pred_fallthru
      _
    // Predicated region
    $region22: #{tpu_custom_call.1} parent=1 // pred_check
      _
    $region23: #{tpu_custom_call.1} parent=1 // pred_check_branch
      %168 = sbr.rel (0) target = $region25
    $region24: #{tpu_custom_call.1} parent=1 // pred_region
      %169 = dma.done [#allocation4], 128
    $region25: #{tpu_custom_call.1} parent=1 // pred_fallthru
      _
    %170 = vsyncpa [#allocation3], 1
    %171 = vsyncpa [#allocation4], 1

</llo_original>
